<compile_context>
chip_gen: v5e
topology: v5e:2x2
jax: 0.10.0
libtpu: 0.0.40
codegen_flags: <defaults>
</compile_context>

<pallas_src>
import numpy as np
import jax
import jax.numpy as jnp
from jax.experimental import pallas as pl
from jax.experimental.pallas import tpu as pltpu


def _round_up(n, m):
    return (n + m - 1) // m * m


def _make_ffm_kernel(num_fields, dp, lin_row):
    """Builds the kernel closure over static layout constants."""
    F = num_fields

    def kernel(idx_ref, w3_ref, bias_ref, out_ref, g_ref):
        # idx_ref : (F, TB)     int32 VMEM   idx[j, b] = x[b, j] + offsets[j]
        # w3_ref  : (3, R, Vp)  bf16  VMEM   f32 tables split into 3 bf16 planes
        # bias_ref: (1, 1)      f32   SMEM   linear bias
        # out_ref : (1, TB)     f32   VMEM   lane-dense output tile
        # g_ref   : (F, R, TB)  f32   VMEM   scratch: g_ref[j, i*dp+d, b]
        #                                    = emb_tables[i, idx[b, j], d]
        _, tb = idx_ref.shape
        _, _, vp = w3_ref.shape

        # Hoisted loop invariants (JAX does not CSE broadcast_in_dim).
        iota_v = jax.lax.broadcasted_iota(jnp.int32, (vp, tb), 0)
        w_hi = w3_ref[0]
        w_md = w3_ref[1]
        w_lo = w3_ref[2]

        # ---------- Phase 1: fused gather via one-hot MXU matmuls ----------
        # One (R, Vp) x (Vp, TB) matmul triplet per field column j.  Exactly
        # one 1 per one-hot column => hi+mid+lo reconstructs the f32 row.
        for j in range(F):
            idx_j = idx_ref[pl.ds(j, 1), :]                       # (1, TB)
            onehot = jnp.where(iota_v == idx_j, 1.0, 0.0).astype(jnp.bfloat16)
            g = jnp.dot(w_hi, onehot, preferred_element_type=jnp.float32)
            g = g + jnp.dot(w_md, onehot, preferred_element_type=jnp.float32)
            g = g + jnp.dot(w_lo, onehot, preferred_element_type=jnp.float32)
            g_ref[j] = g                                          # (R, TB)

        # ---------- Phase 2: pairwise interactions + linear term ----------
        # Per-pair (dp, TB) ref slices keep the live vreg set small; two
        # partial accumulators expose ILP across the VALU slots.
        acc0 = jnp.zeros((dp, tb), jnp.float32)
        acc1 = jnp.zeros((dp, tb), jnp.float32)
        pair = 0
        for i in range(F - 1):
            for j in range(i + 1, F):
                xs_ij = g_ref[j, pl.ds(i * dp, dp), :]   # emb_i[idx[:, j]]
                xs_ji = g_ref[i, pl.ds(j * dp, dp), :]   # emb_j[idx[:, i]]
                if pair % 2 == 0:
                    acc0 = acc0 + xs_ij * xs_ji
                else:
                    acc1 = acc1 + xs_ij * xs_ji
                pair += 1
        ffm = jnp.sum(acc0 + acc1, axis=0, keepdims=True)         # (1, TB)

        lin = jnp.zeros((1, tb), jnp.float32)
        for j in range(F):
            lin = lin + g_ref[j, pl.ds(lin_row, 1), :]            # (1, TB)

        out_ref[...] = lin + ffm + bias_ref[0, 0]

    return kernel


def ffm_forward(x, emb_tables, lin_table, bias, offsets, *, block_b=1024):
    """Pallas-backed FFM forward pass. Returns shape (B,) float32."""
    B, F = x.shape
    V, D = emb_tables.shape[1], emb_tables.shape[2]

    # Static layout constants (tile-aligned so no masked MXU/sublane ops).
    dp = _round_up(D, 8)                 # sublane-aligned per-field stride
    lin_row = F * dp                     # row holding the linear-term weights
    R = _round_up(lin_row + 1, 16)       # bf16 sublane tile = 16
    vp = _round_up(V, 128)               # contraction dim, lane-aligned

    # ---- Pack the (tiny) tables once: rows = [emb_0 dims, ..., emb_{F-1} dims, linear]
    wt = jnp.transpose(emb_tables.astype(jnp.float32), (0, 2, 1))   # (F, D, V)
    wt = jnp.pad(wt, ((0, 0), (0, dp - D), (0, 0)))                 # (F, dp, V)
    w = wt.reshape(F * dp, V)
    w = jnp.concatenate([w, lin_table[:, 0][None, :].astype(jnp.float32)], axis=0)
    w = jnp.pad(w, ((0, R - w.shape[0]), (0, vp - V)))              # (R, vp) f32

    # Split f32 weights into 3 bf16 planes: hi + mid + lo ~= w to ~2^-24 rel.
    w_hi = w.astype(jnp.bfloat16)
    r1 = w - w_hi.astype(jnp.float32)
    w_md = r1.astype(jnp.bfloat16)
    r2 = r1 - w_md.astype(jnp.float32)
    w_lo = r2.astype(jnp.bfloat16)
    w3 = jnp.stack([w_hi, w_md, w_lo], axis=0)                      # (3, R, vp)

    # ---- Batch tiling: lane-dense, >=2 grid steps when possible (megacore).
    B128 = _round_up(B, 128)
    TB = min(_round_up(block_b, 128), B128)
    if B128 // TB < 2 and B128 >= 256:
        TB = _round_up(B128 // 2, 128)
    B_pad = _round_up(B, TB)

    idx = (x + offsets[None, :]).astype(jnp.int32)                  # (B, F)
    idx_t = jnp.pad(idx, ((0, B_pad - B), (0, 0))).T                # (F, B_pad)
    bias2d = bias.reshape(1, 1).astype(jnp.float32)

    kernel = _make_ffm_kernel(F, dp, lin_row)
    grid = (B_pad // TB,)
    out = pl.pallas_call(
        kernel,
        out_shape=jax.ShapeDtypeStruct((1, B_pad), jnp.float32),
        grid=grid,
        in_specs=[
            pl.BlockSpec((F, TB), lambda b: (0, b)),               # indices, batch on lanes
            pl.BlockSpec((3, R, vp), lambda b: (0, 0, 0)),         # packed tables, VMEM-resident
            pl.BlockSpec(memory_space=pltpu.MemorySpace.SMEM),     # scalar bias
        ],
        out_specs=pl.BlockSpec((1, TB), lambda b: (0, b)),
        scratch_shapes=[pltpu.VMEM((F, R, TB), jnp.float32)],      # gathered slabs
        compiler_params=pltpu.CompilerParams(
            dimension_semantics=("parallel",),
        ),
    )(idx_t, w3, bias2d)
    return out[0, :B]


def ffm_reference(x, emb_tables, lin_table, bias, offsets):
    """Pure-JAX reference matching the PyTorch semantics."""
    F = x.shape[1]
    idx = (x + offsets[None, :]).astype(jnp.int32)
    xs = [emb_tables[i][idx] for i in range(F)]               # each (B, F, D)
    ix = [xs[j][:, i] * xs[i][:, j]
          for i in range(F - 1) for j in range(i + 1, F)]
    ix = jnp.stack(ix, axis=1)                                # (B, num_pairs, D)
    ffm_term = jnp.sum(jnp.sum(ix, axis=1), axis=1, keepdims=True)  # (B, 1)
    linear = jnp.sum(lin_table[idx], axis=1) + bias           # (B, 1)
    return (linear + ffm_term)[:, 0]


if __name__ == "__main__":
    # Small, deterministic configuration.
    field_dims = np.array([8, 12, 6, 10], dtype=np.int32)
    num_fields = len(field_dims)             # F = 4
    input_dim = int(np.sum(field_dims))      # V = 36
    embed_dim = 8                            # D
    batch = 8                                # B

    offsets = jnp.array((0, *np.cumsum(field_dims)[:-1]), dtype=jnp.int32)

    key = jax.random.PRNGKey(0)
    k_emb, k_lin, k_x = jax.random.split(key, 3)

    # Xavier-uniform init for the F field-aware embedding tables.
    bound = float(np.sqrt(6.0 / (input_dim + embed_dim)))
    emb_tables = jax.random.uniform(
        k_emb, (num_fields, input_dim, embed_dim),
        minval=-bound, maxval=bound, dtype=jnp.float32)
    # Linear-term embedding (torch.nn.Embedding default ~ N(0,1)) and zero bias.
    lin_table = jax.random.normal(k_lin, (input_dim, 1), dtype=jnp.float32)
    bias = jnp.zeros((1,), dtype=jnp.float32)

    # Per-field integer indices in [0, field_dims[f]).
    x_cols = []
    for kf, fd in zip(jax.random.split(k_x, num_fields), field_dims):
        x_cols.append(jax.random.randint(kf, (batch,), 0, int(fd)))
    x = jnp.stack(x_cols, axis=1).astype(jnp.int32)           # (B, F)

    out = ffm_forward(x, emb_tables, lin_table, bias, offsets)
    out = jax.block_until_ready(out)

    ref = ffm_reference(x, emb_tables, lin_table, bias, offsets)
    np.testing.assert_allclose(np.asarray(out), np.asarray(ref),
                               rtol=1e-5, atol=1e-5)

    print("KERNEL_OK")
</pallas_src>

<mosaic_0001>
module attributes {stable_mosaic.version = 11 : i64} {
  func.func @kernel(%arg0: i32, %arg1: memref<4x128xi32, #tpu.memory_space<vmem>>, %arg2: memref<3x48x128xbf16, #tpu.memory_space<vmem>>, %arg3: memref<1x1xf32, #tpu.memory_space<smem>>, %arg4: memref<1x128xf32, #tpu.memory_space<vmem>>, %arg5: memref<4x48x128xf32, #tpu.memory_space<vmem>>) attributes {dimension_semantics = [#tpu.dimension_semantics<parallel>], iteration_bounds = array<i64: 1>, scalar_prefetch = 0 : i64, scratch_operands = 1 : i64, tpu.core_type = #tpu.core_type<tc>, window_params = [{transform_indices = @transform_0, window_bounds = array<i64: 4, 128>}, {pipeline_mode = #tpu.pipeline_mode<synchronous>, transform_indices = @transform_1, window_bounds = array<i64: 3, 48, 128>}, {transform_indices = @transform_2, window_bounds = array<i64: 1, 1>}, {transform_indices = @transform_3, window_bounds = array<i64: 1, 128>}]} {
    %0 = tpu.iota {dimensions = array<i32: 0>} : vector<128x128xi32>
    %c0 = arith.constant 0 : index
    %c0_0 = arith.constant 0 : index
    %c0_1 = arith.constant 0 : index
    %1 = vector.load %arg2[%c0, %c0_0, %c0_1] : memref<3x48x128xbf16, #tpu.memory_space<vmem>>, vector<1x48x128xbf16>
    %2 = vector.shape_cast %1 : vector<1x48x128xbf16> to vector<48x128xbf16>
    %c1 = arith.constant 1 : index
    %c0_2 = arith.constant 0 : index
    %c0_3 = arith.constant 0 : index
    %3 = vector.load %arg2[%c1, %c0_2, %c0_3] : memref<3x48x128xbf16, #tpu.memory_space<vmem>>, vector<1x48x128xbf16>
    %4 = vector.shape_cast %3 : vector<1x48x128xbf16> to vector<48x128xbf16>
    %c2 = arith.constant 2 : index
    %c0_4 = arith.constant 0 : index
    %c0_5 = arith.constant 0 : index
    %5 = vector.load %arg2[%c2, %c0_4, %c0_5] : memref<3x48x128xbf16, #tpu.memory_space<vmem>>, vector<1x48x128xbf16>
    %6 = vector.shape_cast %5 : vector<1x48x128xbf16> to vector<48x128xbf16>
    %c0_6 = arith.constant 0 : index
    %c0_7 = arith.constant 0 : index
    %7 = vector.load %arg1[%c0_6, %c0_7] : memref<4x128xi32, #tpu.memory_space<vmem>>, vector<1x128xi32>
    %8 = vector.broadcast %7 : vector<1x128xi32> to vector<128x128xi32>
    %9 = arith.cmpi eq, %0, %8 : vector<128x128xi32>
    %cst = arith.constant 1.000000e+00 : f32
    %cst_8 = arith.constant 0.000000e+00 : f32
    %10 = vector.broadcast %cst : f32 to vector<128x128xf32>
    %11 = vector.broadcast %cst_8 : f32 to vector<128x128xf32>
    %12 = arith.select %9, %10, %11 : vector<128x128xi1>, vector<128x128xf32>
    %13 = arith.truncf %12 : vector<128x128xf32> to vector<128x128xbf16>
    %cst_9 = arith.constant dense<0.000000e+00> : vector<48x128xf32>
    %14 = tpu.matmul %2, %13, %cst_9 {dimension_numbers = #tpu.dot_dimension_numbers<[1], [0], [0], [1], [0, 0, 1, 1], [], []>} : vector<48x128xbf16>, vector<128x128xbf16>, vector<48x128xf32> -> vector<48x128xf32>
    %cst_10 = arith.constant dense<0.000000e+00> : vector<48x128xf32>
    %15 = tpu.matmul %4, %13, %cst_10 {dimension_numbers = #tpu.dot_dimension_numbers<[1], [0], [0], [1], [0, 0, 1, 1], [], []>} : vector<48x128xbf16>, vector<128x128xbf16>, vector<48x128xf32> -> vector<48x128xf32>
    %16 = arith.addf %14, %15 : vector<48x128xf32>
    %cst_11 = arith.constant dense<0.000000e+00> : vector<48x128xf32>
    %17 = tpu.matmul %6, %13, %cst_11 {dimension_numbers = #tpu.dot_dimension_numbers<[1], [0], [0], [1], [0, 0, 1, 1], [], []>} : vector<48x128xbf16>, vector<128x128xbf16>, vector<48x128xf32> -> vector<48x128xf32>
    %18 = arith.addf %16, %17 : vector<48x128xf32>
    %c0_12 = arith.constant 0 : index
    %c0_13 = arith.constant 0 : index
    %c0_14 = arith.constant 0 : index
    %19 = vector.load %arg5[%c0_12, %c0_13, %c0_14] : memref<4x48x128xf32, #tpu.memory_space<vmem>>, vector<1x48x128xf32>
    %20 = vector.shape_cast %19 : vector<1x48x128xf32> to vector<48x128xf32>
    %21 = vector.shape_cast %18 : vector<48x128xf32> to vector<1x48x128xf32>
    tpu.vector_store %arg5[%c0_12, %c0_13, %c0_14], %21 {strides = array<i32>} : memref<4x48x128xf32, #tpu.memory_space<vmem>>, vector<1x48x128xf32>,
    %c1_15 = arith.constant 1 : index
    %c0_16 = arith.constant 0 : index
    %22 = vector.load %arg1[%c1_15, %c0_16] : memref<4x128xi32, #tpu.memory_space<vmem>>, vector<1x128xi32>
    %23 = vector.broadcast %22 : vector<1x128xi32> to vector<128x128xi32>
    %24 = arith.cmpi eq, %0, %23 : vector<128x128xi32>
    %cst_17 = arith.constant 1.000000e+00 : f32
    %cst_18 = arith.constant 0.000000e+00 : f32
    %25 = vector.broadcast %cst_17 : f32 to vector<128x128xf32>
    %26 = vector.broadcast %cst_18 : f32 to vector<128x128xf32>
    %27 = arith.select %24, %25, %26 : vector<128x128xi1>, vector<128x128xf32>
    %28 = arith.truncf %27 : vector<128x128xf32> to vector<128x128xbf16>
    %cst_19 = arith.constant dense<0.000000e+00> : vector<48x128xf32>
    %29 = tpu.matmul %2, %28, %cst_19 {dimension_numbers = #tpu.dot_dimension_numbers<[1], [0], [0], [1], [0, 0, 1, 1], [], []>} : vector<48x128xbf16>, vector<128x128xbf16>, vector<48x128xf32> -> vector<48x128xf32>
    %cst_20 = arith.constant dense<0.000000e+00> : vector<48x128xf32>
    %30 = tpu.matmul %4, %28, %cst_20 {dimension_numbers = #tpu.dot_dimension_numbers<[1], [0], [0], [1], [0, 0, 1, 1], [], []>} : vector<48x128xbf16>, vector<128x128xbf16>, vector<48x128xf32> -> vector<48x128xf32>
    %31 = arith.addf %29, %30 : vector<48x128xf32>
    %cst_21 = arith.constant dense<0.000000e+00> : vector<48x128xf32>
    %32 = tpu.matmul %6, %28, %cst_21 {dimension_numbers = #tpu.dot_dimension_numbers<[1], [0], [0], [1], [0, 0, 1, 1], [], []>} : vector<48x128xbf16>, vector<128x128xbf16>, vector<48x128xf32> -> vector<48x128xf32>
    %33 = arith.addf %31, %32 : vector<48x128xf32>
    %c1_22 = arith.constant 1 : index
    %c0_23 = arith.constant 0 : index
    %c0_24 = arith.constant 0 : index
    %34 = vector.load %arg5[%c1_22, %c0_23, %c0_24] : memref<4x48x128xf32, #tpu.memory_space<vmem>>, vector<1x48x128xf32>
    %35 = vector.shape_cast %34 : vector<1x48x128xf32> to vector<48x128xf32>
    %36 = vector.shape_cast %33 : vector<48x128xf32> to vector<1x48x128xf32>
    tpu.vector_store %arg5[%c1_22, %c0_23, %c0_24], %36 {strides = array<i32>} : memref<4x48x128xf32, #tpu.memory_space<vmem>>, vector<1x48x128xf32>,
    %c2_25 = arith.constant 2 : index
    %c0_26 = arith.constant 0 : index
    %37 = vector.load %arg1[%c2_25, %c0_26] : memref<4x128xi32, #tpu.memory_space<vmem>>, vector<1x128xi32>
    %38 = vector.broadcast %37 : vector<1x128xi32> to vector<128x128xi32>
    %39 = arith.cmpi eq, %0, %38 : vector<128x128xi32>
    %cst_27 = arith.constant 1.000000e+00 : f32
    %cst_28 = arith.constant 0.000000e+00 : f32
    %40 = vector.broadcast %cst_27 : f32 to vector<128x128xf32>
    %41 = vector.broadcast %cst_28 : f32 to vector<128x128xf32>
    %42 = arith.select %39, %40, %41 : vector<128x128xi1>, vector<128x128xf32>
    %43 = arith.truncf %42 : vector<128x128xf32> to vector<128x128xbf16>
    %cst_29 = arith.constant dense<0.000000e+00> : vector<48x128xf32>
    %44 = tpu.matmul %2, %43, %cst_29 {dimension_numbers = #tpu.dot_dimension_numbers<[1], [0], [0], [1], [0, 0, 1, 1], [], []>} : vector<48x128xbf16>, vector<128x128xbf16>, vector<48x128xf32> -> vector<48x128xf32>
    %cst_30 = arith.constant dense<0.000000e+00> : vector<48x128xf32>
    %45 = tpu.matmul %4, %43, %cst_30 {dimension_numbers = #tpu.dot_dimension_numbers<[1], [0], [0], [1], [0, 0, 1, 1], [], []>} : vector<48x128xbf16>, vector<128x128xbf16>, vector<48x128xf32> -> vector<48x128xf32>
    %46 = arith.addf %44, %45 : vector<48x128xf32>
    %cst_31 = arith.constant dense<0.000000e+00> : vector<48x128xf32>
    %47 = tpu.matmul %6, %43, %cst_31 {dimension_numbers = #tpu.dot_dimension_numbers<[1], [0], [0], [1], [0, 0, 1, 1], [], []>} : vector<48x128xbf16>, vector<128x128xbf16>, vector<48x128xf32> -> vector<48x128xf32>
    %48 = arith.addf %46, %47 : vector<48x128xf32>
    %c2_32 = arith.constant 2 : index
    %c0_33 = arith.constant 0 : index
    %c0_34 = arith.constant 0 : index
    %49 = vector.load %arg5[%c2_32, %c0_33, %c0_34] : memref<4x48x128xf32, #tpu.memory_space<vmem>>, vector<1x48x128xf32>
    %50 = vector.shape_cast %49 : vector<1x48x128xf32> to vector<48x128xf32>
    %51 = vector.shape_cast %48 : vector<48x128xf32> to vector<1x48x128xf32>
    tpu.vector_store %arg5[%c2_32, %c0_33, %c0_34], %51 {strides = array<i32>} : memref<4x48x128xf32, #tpu.memory_space<vmem>>, vector<1x48x128xf32>,
    %c3 = arith.constant 3 : index
    %c0_35 = arith.constant 0 : index
    %52 = vector.load %arg1[%c3, %c0_35] : memref<4x128xi32, #tpu.memory_space<vmem>>, vector<1x128xi32>
    %53 = vector.broadcast %52 : vector<1x128xi32> to vector<128x128xi32>
    %54 = arith.cmpi eq, %0, %53 : vector<128x128xi32>
    %cst_36 = arith.constant 1.000000e+00 : f32
    %cst_37 = arith.constant 0.000000e+00 : f32
    %55 = vector.broadcast %cst_36 : f32 to vector<128x128xf32>
    %56 = vector.broadcast %cst_37 : f32 to vector<128x128xf32>
    %57 = arith.select %54, %55, %56 : vector<128x128xi1>, vector<128x128xf32>
    %58 = arith.truncf %57 : vector<128x128xf32> to vector<128x128xbf16>
    %cst_38 = arith.constant dense<0.000000e+00> : vector<48x128xf32>
    %59 = tpu.matmul %2, %58, %cst_38 {dimension_numbers = #tpu.dot_dimension_numbers<[1], [0], [0], [1], [0, 0, 1, 1], [], []>} : vector<48x128xbf16>, vector<128x128xbf16>, vector<48x128xf32> -> vector<48x128xf32>
    %cst_39 = arith.constant dense<0.000000e+00> : vector<48x128xf32>
    %60 = tpu.matmul %4, %58, %cst_39 {dimension_numbers = #tpu.dot_dimension_numbers<[1], [0], [0], [1], [0, 0, 1, 1], [], []>} : vector<48x128xbf16>, vector<128x128xbf16>, vector<48x128xf32> -> vector<48x128xf32>
    %61 = arith.addf %59, %60 : vector<48x128xf32>
    %cst_40 = arith.constant dense<0.000000e+00> : vector<48x128xf32>
    %62 = tpu.matmul %6, %58, %cst_40 {dimension_numbers = #tpu.dot_dimension_numbers<[1], [0], [0], [1], [0, 0, 1, 1], [], []>} : vector<48x128xbf16>, vector<128x128xbf16>, vector<48x128xf32> -> vector<48x128xf32>
    %63 = arith.addf %61, %62 : vector<48x128xf32>
    %c3_41 = arith.constant 3 : index
    %c0_42 = arith.constant 0 : index
    %c0_43 = arith.constant 0 : index
    %64 = vector.load %arg5[%c3_41, %c0_42, %c0_43] : memref<4x48x128xf32, #tpu.memory_space<vmem>>, vector<1x48x128xf32>
    %65 = vector.shape_cast %64 : vector<1x48x128xf32> to vector<48x128xf32>
    %66 = vector.shape_cast %63 : vector<48x128xf32> to vector<1x48x128xf32>
    tpu.vector_store %arg5[%c3_41, %c0_42, %c0_43], %66 {strides = array<i32>} : memref<4x48x128xf32, #tpu.memory_space<vmem>>, vector<1x48x128xf32>,
    %cst_44 = arith.constant 0.000000e+00 : f32
    %67 = vector.broadcast %cst_44 : f32 to vector<8x128xf32>
    %cst_45 = arith.constant 0.000000e+00 : f32
    %68 = vector.broadcast %cst_45 : f32 to vector<8x128xf32>
    %c1_46 = arith.constant 1 : index
    %c0_47 = arith.constant 0 : index
    %c0_48 = arith.constant 0 : index
    %69 = vector.load %arg5[%c1_46, %c0_47, %c0_48] : memref<4x48x128xf32, #tpu.memory_space<vmem>>, vector<1x8x128xf32>
    %70 = vector.shape_cast %69 : vector<1x8x128xf32> to vector<8x128xf32>
    %c0_49 = arith.constant 0 : index
    %c8 = arith.constant 8 : index
    %c0_50 = arith.constant 0 : index
    %71 = vector.load %arg5[%c0_49, %c8, %c0_50] : memref<4x48x128xf32, #tpu.memory_space<vmem>>, vector<1x8x128xf32>
    %72 = vector.shape_cast %71 : vector<1x8x128xf32> to vector<8x128xf32>
    %73 = arith.mulf %70, %72 : vector<8x128xf32>
    %74 = arith.addf %67, %73 : vector<8x128xf32>
    %c2_51 = arith.constant 2 : index
    %c0_52 = arith.constant 0 : index
    %c0_53 = arith.constant 0 : index
    %75 = vector.load %arg5[%c2_51, %c0_52, %c0_53] : memref<4x48x128xf32, #tpu.memory_space<vmem>>, vector<1x8x128xf32>
    %76 = vector.shape_cast %75 : vector<1x8x128xf32> to vector<8x128xf32>
    %c0_54 = arith.constant 0 : index
    %c16 = arith.constant 16 : index
    %c0_55 = arith.constant 0 : index
    %77 = vector.load %arg5[%c0_54, %c16, %c0_55] : memref<4x48x128xf32, #tpu.memory_space<vmem>>, vector<1x8x128xf32>
    %78 = vector.shape_cast %77 : vector<1x8x128xf32> to vector<8x128xf32>
    %79 = arith.mulf %76, %78 : vector<8x128xf32>
    %80 = arith.addf %68, %79 : vector<8x128xf32>
    %c3_56 = arith.constant 3 : index
    %c0_57 = arith.constant 0 : index
    %c0_58 = arith.constant 0 : index
    %81 = vector.load %arg5[%c3_56, %c0_57, %c0_58] : memref<4x48x128xf32, #tpu.memory_space<vmem>>, vector<1x8x128xf32>
    %82 = vector.shape_cast %81 : vector<1x8x128xf32> to vector<8x128xf32>
    %c0_59 = arith.constant 0 : index
    %c24 = arith.constant 24 : index
    %c0_60 = arith.constant 0 : index
    %83 = vector.load %arg5[%c0_59, %c24, %c0_60] : memref<4x48x128xf32, #tpu.memory_space<vmem>>, vector<1x8x128xf32>
    %84 = vector.shape_cast %83 : vector<1x8x128xf32> to vector<8x128xf32>
    %85 = arith.mulf %82, %84 : vector<8x128xf32>
    %86 = arith.addf %74, %85 : vector<8x128xf32>
    %c2_61 = arith.constant 2 : index
    %c8_62 = arith.constant 8 : index
    %c0_63 = arith.constant 0 : index
    %87 = vector.load %arg5[%c2_61, %c8_62, %c0_63] : memref<4x48x128xf32, #tpu.memory_space<vmem>>, vector<1x8x128xf32>
    %88 = vector.shape_cast %87 : vector<1x8x128xf32> to vector<8x128xf32>
    %c1_64 = arith.constant 1 : index
    %c16_65 = arith.constant 16 : index
    %c0_66 = arith.constant 0 : index
    %89 = vector.load %arg5[%c1_64, %c16_65, %c0_66] : memref<4x48x128xf32, #tpu.memory_space<vmem>>, vector<1x8x128xf32>
    %90 = vector.shape_cast %89 : vector<1x8x128xf32> to vector<8x128xf32>
    %91 = arith.mulf %88, %90 : vector<8x128xf32>
    %92 = arith.addf %80, %91 : vector<8x128xf32>
    %c3_67 = arith.constant 3 : index
    %c8_68 = arith.constant 8 : index
    %c0_69 = arith.constant 0 : index
    %93 = vector.load %arg5[%c3_67, %c8_68, %c0_69] : memref<4x48x128xf32, #tpu.memory_space<vmem>>, vector<1x8x128xf32>
    %94 = vector.shape_cast %93 : vector<1x8x128xf32> to vector<8x128xf32>
    %c1_70 = arith.constant 1 : index
    %c24_71 = arith.constant 24 : index
    %c0_72 = arith.constant 0 : index
    %95 = vector.load %arg5[%c1_70, %c24_71, %c0_72] : memref<4x48x128xf32, #tpu.memory_space<vmem>>, vector<1x8x128xf32>
    %96 = vector.shape_cast %95 : vector<1x8x128xf32> to vector<8x128xf32>
    %97 = arith.mulf %94, %96 : vector<8x128xf32>
    %98 = arith.addf %86, %97 : vector<8x128xf32>
    %c3_73 = arith.constant 3 : index
    %c16_74 = arith.constant 16 : index
    %c0_75 = arith.constant 0 : index
    %99 = vector.load %arg5[%c3_73, %c16_74, %c0_75] : memref<4x48x128xf32, #tpu.memory_space<vmem>>, vector<1x8x128xf32>
    %100 = vector.shape_cast %99 : vector<1x8x128xf32> to vector<8x128xf32>
    %c2_76 = arith.constant 2 : index
    %c24_77 = arith.constant 24 : index
    %c0_78 = arith.constant 0 : index
    %101 = vector.load %arg5[%c2_76, %c24_77, %c0_78] : memref<4x48x128xf32, #tpu.memory_space<vmem>>, vector<1x8x128xf32>
    %102 = vector.shape_cast %101 : vector<1x8x128xf32> to vector<8x128xf32>
    %103 = arith.mulf %100, %102 : vector<8x128xf32>
    %104 = arith.addf %92, %103 : vector<8x128xf32>
    %105 = arith.addf %98, %104 : vector<8x128xf32>
    %cst_79 = arith.constant dense<0.000000e+00> : vector<128xf32>
    %106 = vector.multi_reduction <add>, %105, %cst_79 [0] : vector<8x128xf32> to vector<128xf32>
    %107 = vector.shape_cast %106 : vector<128xf32> to vector<1x128xf32>
    %cst_80 = arith.constant 0.000000e+00 : f32
    %108 = vector.broadcast %cst_80 : f32 to vector<1x128xf32>
    %c0_81 = arith.constant 0 : index
    %c32 = arith.constant 32 : index
    %c0_82 = arith.constant 0 : index
    %109 = vector.load %arg5[%c0_81, %c32, %c0_82] : memref<4x48x128xf32, #tpu.memory_space<vmem>>, vector<1x1x128xf32>
    %110 = vector.shape_cast %109 : vector<1x1x128xf32> to vector<1x128xf32>
    %111 = arith.addf %108, %110 : vector<1x128xf32>
    %c1_83 = arith.constant 1 : index
    %c32_84 = arith.constant 32 : index
    %c0_85 = arith.constant 0 : index
    %112 = vector.load %arg5[%c1_83, %c32_84, %c0_85] : memref<4x48x128xf32, #tpu.memory_space<vmem>>, vector<1x1x128xf32>
    %113 = vector.shape_cast %112 : vector<1x1x128xf32> to vector<1x128xf32>
    %114 = arith.addf %111, %113 : vector<1x128xf32>
    %c2_86 = arith.constant 2 : index
    %c32_87 = arith.constant 32 : index
    %c0_88 = arith.constant 0 : index
    %115 = vector.load %arg5[%c2_86, %c32_87, %c0_88] : memref<4x48x128xf32, #tpu.memory_space<vmem>>, vector<1x1x128xf32>
    %116 = vector.shape_cast %115 : vector<1x1x128xf32> to vector<1x128xf32>
    %117 = arith.addf %114, %116 : vector<1x128xf32>
    %c3_89 = arith.constant 3 : index
    %c32_90 = arith.constant 32 : index
    %c0_91 = arith.constant 0 : index
    %118 = vector.load %arg5[%c3_89, %c32_90, %c0_91] : memref<4x48x128xf32, #tpu.memory_space<vmem>>, vector<1x1x128xf32>
    %119 = vector.shape_cast %118 : vector<1x1x128xf32> to vector<1x128xf32>
    %120 = arith.addf %117, %119 : vector<1x128xf32>
    %121 = arith.addf %120, %107 : vector<1x128xf32>
    %c0_92 = arith.constant 0 : index
    %c0_93 = arith.constant 0 : index
    %122 = memref.load %arg3[%c0_92, %c0_93] : memref<1x1xf32, #tpu.memory_space<smem>>
    %123 = vector.broadcast %122 : f32 to vector<1x128xf32>
    %124 = arith.addf %121, %123 : vector<1x128xf32>
    %c0_94 = arith.constant 0 : index
    %c0_95 = arith.constant 0 : index
    %125 = vector.load %arg4[%c0_94, %c0_95] : memref<1x128xf32, #tpu.memory_space<vmem>>, vector<1x128xf32>
    tpu.vector_store %arg4[%c0_94, %c0_95], %124 {strides = array<i32>} : memref<1x128xf32, #tpu.memory_space<vmem>>, vector<1x128xf32>,
    return
  }
  func.func @transform_0(%arg0: i32) -> (i32, i32) {
    %c0_i32 = arith.constant 0 : i32
    %c0_i32_0 = arith.constant 0 : i32
    return %c0_i32, %arg0 : i32, i32
  }
  func.func @transform_1(%arg0: i32) -> (i32, i32, i32) {
    %c0_i32 = arith.constant 0 : i32
    %c0_i32_0 = arith.constant 0 : i32
    %c0_i32_1 = arith.constant 0 : i32
    %c0_i32_2 = arith.constant 0 : i32
    return %c0_i32, %c0_i32_0, %c0_i32_1 : i32, i32, i32
  }
  func.func @transform_2(%arg0: i32) -> (i32, i32) {
    %c0_i32 = arith.constant 0 : i32
    %c0_i32_0 = arith.constant 0 : i32
    %c0_i32_1 = arith.constant 0 : i32
    return %c0_i32, %c0_i32_0 : i32, i32
  }
  func.func @transform_3(%arg0: i32) -> (i32, i32) {
    %c0_i32 = arith.constant 0 : i32
    %c0_i32_0 = arith.constant 0 : i32
    return %c0_i32, %arg0 : i32, i32
  }
}

</mosaic_0001>

<llo_original>
// kernel: tpu_custom_call.1
$region0: #{tpu_custom_call.1}
  #allocation0 [shape = 'u32[]', space=smem, size = 0x4, offset = 0x4, fixed_abs, tag = 'smem constant byte address 0x4 - core index']
  #allocation1 [shape = 'u32[72,128]{1,0:T(1,128)}', space=vmem, size = 0x9000, scoped, tag = 'internal scratch']
  #allocation2 [shape = 'f32[4,48,128]{2,1,0:T(8,128)}', space=vmem, size = 0x18000, scoped, tag = 'scratch operand']
  #allocation3 [shape = 'f32[1,1]{1,0:T(1,128)S(6)}', space=smem, size = 0x200, scoped, tag = 'scoped memory for tpu_custom_call.1']
  %s0 = inlined_call_operand.hbm [shape: s32[4,128], index: 0, kind: input, shape index: {}]
  %s1 = inlined_call_operand.hbm [shape: bf16[3,48,128], index: 1, kind: input, shape index: {}]
  %s2 = inlined_call_operand.<no memory space> [shape: f32[1,1], index: 2, kind: input, shape index: {}]
  %s3 = inlined_call_operand.hbm [shape: f32[1,128], index: 3, kind: output, shape index: {}]
  %s4 = sld [smem:[#allocation0]]
  $region30: #{tpu_custom_call.1} parent=0
    _
  %s6 = ssub.s32 1, %s4
  %s7 = scalar_select 0, %s6, %s4
  %8 = sst [smem:[#allocation3]] %s2
  $region1: #{tpu_custom_call.1} parent=0
    #allocation4 [shape = 'u8[2048]{0}', space=vmem, size = 0x800, scoped, tag = 'input window, operand 0, single buffered']
    #allocation5 [shape = 's32[1]{0}', space=sflag, size = 0x4, scoped, tag = 'scoped memory for tpu_custom_call.1']
    #allocation6 [shape = 's32[1]{0}', space=sflag, size = 0x4, scoped, tag = 'scoped memory for tpu_custom_call.1']
    #allocation7 [shape = 'u8[36864]{0}', space=vmem, size = 0x9000, scoped, tag = 'input window, operand 1, single buffered']
    #allocation8 [shape = 's32[1]{0}', space=sflag, size = 0x4, scoped, tag = 'scoped memory for tpu_custom_call.1']
    #allocation9 [shape = 'u8[512]{0}', space=vmem, size = 0x400, scoped, tag = 'output window, operand 0, single buffered']
    %9 = vsyncpa [#allocation5], 0
    %10 = vsyncpa [#allocation8], 0
    %11 = vsyncpa [#allocation6], 0
    // Predicated region
    $region2: #{tpu_custom_call.1} parent=1 // pred_check
      _
    $region3: #{tpu_custom_call.1} parent=1 // pred_check_branch
      %13 = sbr.rel (0) target = $region5
    $region4: #{tpu_custom_call.1} parent=1 // pred_region
      %15 = vsyncadd [#allocation5], 0
      %s17 = sshll.u32 %s0, 4
      %s18 = int_to_ptr.hbm [resolvable:$true] %s17
      %s19 = sshll.u32 [#allocation4], 4
      %s20 = int_to_ptr.vmem [resolvable:$true] %s19
      %22 = dma.hbm_to_vmem [thread:$0]  %s18, 64, %s20, [#allocation5]
    $region5: #{tpu_custom_call.1} parent=1 // pred_fallthru
      _
    // Predicated region
    $region6: #{tpu_custom_call.1} parent=1 // pred_check
      _
    $region7: #{tpu_custom_call.1} parent=1 // pred_check_branch
      %24 = sbr.rel (0) target = $region9
    $region8: #{tpu_custom_call.1} parent=1 // pred_region
      %26 = vsyncadd [#allocation8], 0
      %s27 = sshll.u32 %s1, 4
      %s28 = int_to_ptr.hbm [resolvable:$true] %s27
      %s29 = sshll.u32 [#allocation7], 4
      %s30 = int_to_ptr.vmem [resolvable:$true] %s29
      %35 = dma.hbm_to_vmem [thread:$0]  %s28, 1152, %s30, [#allocation8], 64, 64, 4
    $region9: #{tpu_custom_call.1} parent=1 // pred_fallthru
      _
    // Predicated region
    $region10: #{tpu_custom_call.1} parent=1 // pred_check
      _
    $region11: #{tpu_custom_call.1} parent=1 // pred_check_branch
      %37 = sbr.rel (0) target = $region13
    $region12: #{tpu_custom_call.1} parent=1 // pred_region
      _
    $region13: #{tpu_custom_call.1} parent=1 // pred_fallthru
      _
    // Predicated region
    $region14: #{tpu_custom_call.1} parent=1 // pred_check
      _
    $region15: #{tpu_custom_call.1} parent=1 // pred_check_branch
      %39 = sbr.rel (0) target = $region17
    $region16: #{tpu_custom_call.1} parent=1 // pred_region
      %41 = dma.done [#allocation5], 64
    $region17: #{tpu_custom_call.1} parent=1 // pred_fallthru
      _
    // Predicated region
    $region18: #{tpu_custom_call.1} parent=1 // pred_check
      _
    $region19: #{tpu_custom_call.1} parent=1 // pred_check_branch
      %43 = sbr.rel (0) target = $region21
    $region20: #{tpu_custom_call.1} parent=1 // pred_region
      %45 = dma.done [#allocation8], 1152
    $region21: #{tpu_custom_call.1} parent=1 // pred_fallthru
      _
    %v46 = vlaneseq
    %v47 = vshrl.u32 %v46, 7
    %v48 = vadd.s32 %v47, 8
    %v49 = vadd.s32 %v47, 16
    %v50 = vadd.s32 %v47, 24
    %v51 = vadd.s32 %v47, 32
    %v52 = vadd.s32 %v47, 40
    %v53 = vadd.s32 %v47, 48
    %v54 = vadd.s32 %v47, 56
    %v55 = vadd.s32 %v47, 64
    %v56 = vadd.s32 %v47, 72
    %v57 = vadd.s32 %v47, 80
    %v58 = vadd.s32 %v47, 88
    %v59 = vadd.s32 %v47, 96
    %v60 = vadd.s32 %v47, 104
    %v61 = vadd.s32 %v47, 112
    %v62 = vadd.s32 %v47, 120
    %v63 = vld [vmem:[#allocation7] sm:$0xf]
    %v64 = vld [vmem:[#allocation7 + $0x4] sm:$0xf]
    %v65 = vld [vmem:[#allocation7 + $0x8] sm:$0xf]
    %v66 = vld [vmem:[#allocation7 + $0xc] sm:$0xf]
    %v67 = vld [vmem:[#allocation7 + $0x10] sm:$0xf]
    %v68 = vld [vmem:[#allocation7 + $0x14] sm:$0xf]
    %s69 = scalar_lea.vmem [#allocation7], 24
    %v70 = vld [vmem:[%s69] sm:$0xf]
    %v71 = vld [vmem:[%s69 + $0x4] sm:$0xf]
    %v72 = vld [vmem:[%s69 + $0x8] sm:$0xf]
    %v73 = vld [vmem:[%s69 + $0xc] sm:$0xf]
    %v74 = vld [vmem:[%s69 + $0x10] sm:$0xf]
    %v75 = vld [vmem:[%s69 + $0x14] sm:$0xf]
    %s76 = scalar_lea.vmem [#allocation7], 48
    %v77 = vld [vmem:[%s76] sm:$0xf]
    %v78 = vld [vmem:[%s76 + $0x4] sm:$0xf]
    %v79 = vld [vmem:[%s76 + $0x8] sm:$0xf]
    %v80 = vld [vmem:[%s76 + $0xc] sm:$0xf]
    %v81 = vld [vmem:[%s76 + $0x10] sm:$0xf]
    %v82 = vld [vmem:[%s76 + $0x14] sm:$0xf]
    %v83 = vld [vmem:[#allocation4] sm:$0x1]
    %v84 = vperm.slane %v83, 0
    %vm85 = vcmp.eq.s32.totalorder %v47, %v84
    %vm86 = vcmp.eq.s32.totalorder %v48, %v84
    %vm87 = vcmp.eq.s32.totalorder %v49, %v84
    %vm88 = vcmp.eq.s32.totalorder %v50, %v84
    %vm89 = vcmp.eq.s32.totalorder %v51, %v84
    %vm90 = vcmp.eq.s32.totalorder %v52, %v84
    %vm91 = vcmp.eq.s32.totalorder %v53, %v84
    %vm92 = vcmp.eq.s32.totalorder %v54, %v84
    %vm93 = vcmp.eq.s32.totalorder %v55, %v84
    %vm94 = vcmp.eq.s32.totalorder %v56, %v84
    %vm95 = vcmp.eq.s32.totalorder %v57, %v84
    %vm96 = vcmp.eq.s32.totalorder %v58, %v84
    %vm97 = vcmp.eq.s32.totalorder %v59, %v84
    %vm98 = vcmp.eq.s32.totalorder %v60, %v84
    %vm99 = vcmp.eq.s32.totalorder %v61, %v84
    %vm100 = vcmp.eq.s32.totalorder %v62, %v84
    %v101 = vsel %vm85, 1.0, 0.0
    %v102 = vsel %vm86, 1.0, 0.0
    %v103 = vsel %vm87, 1.0, 0.0
    %v104 = vsel %vm88, 1.0, 0.0
    %v105 = vsel %vm89, 1.0, 0.0
    %v106 = vsel %vm90, 1.0, 0.0
    %v107 = vsel %vm91, 1.0, 0.0
    %v108 = vsel %vm92, 1.0, 0.0
    %v109 = vsel %vm93, 1.0, 0.0
    %v110 = vsel %vm94, 1.0, 0.0
    %v111 = vsel %vm95, 1.0, 0.0
    %v112 = vsel %vm96, 1.0, 0.0
    %v113 = vsel %vm97, 1.0, 0.0
    %v114 = vsel %vm98, 1.0, 0.0
    %v115 = vsel %vm99, 1.0, 0.0
    %v116 = vsel %vm100, 1.0, 0.0
    %v117 = vpack.c.bf16 %v102, %v101
    %v118 = vpack.c.bf16 %v104, %v103
    %v119 = vpack.c.bf16 %v106, %v105
    %v120 = vpack.c.bf16 %v108, %v107
    %v121 = vpack.c.bf16 %v110, %v109
    %v122 = vpack.c.bf16 %v112, %v111
    %v123 = vpack.c.bf16 %v114, %v113
    %v124 = vpack.c.bf16 %v116, %v115
    %v131 = vunpack.c.l.b16 %v70
    %v132 = vunpack.c.l.b16 %v71
    %v133 = vunpack.c.l.b16 %v72
    %v134 = vunpack.c.l.b16 %v73
    %v135 = vunpack.c.l.b16 %v74
    %v136 = vunpack.c.l.b16 %v75
    %v137 = vpack.c.b16 %v132, %v131
    %v138 = vpack.c.b16 %v134, %v133
    %v139 = vpack.c.b16 %v136, %v135
    %143 = vmatpush.bf16.msra.mxu0 %v124
    %144 = vmatpush.bf16.msra.mxu0 %v123
    %145 = vmatpush.bf16.msra.mxu0 %v122
    %146 = vmatpush.bf16.msra.mxu0 %v121
    %147 = vmatpush.bf16.msra.mxu0 %v120
    %148 = vmatpush.bf16.msra.mxu0 %v119
    %149 = vmatpush.bf16.msra.mxu0 %v118
    %150 = vmatpush.bf16.msra.mxu0 %v117
    %151 = vmatmul.bf16.gmra.mxu0 %v137
    %v152 = vpop.f32.mrf.mxu0
    %v153 = vadd.f32 0.0, %v152
    %v154 = vpop.f32.mrf.mxu0
    %v155 = vadd.f32 0.0, %v154
    %156 = vmatmul.bf16.gmra.mxu0 %v138
    %v157 = vpop.f32.mrf.mxu0
    %v158 = vadd.f32 0.0, %v157
    %v159 = vpop.f32.mrf.mxu0
    %v160 = vadd.f32 0.0, %v159
    %161 = vmatmul.bf16.gmra.mxu0 %v139
    %v162 = vpop.f32.mrf.mxu0
    %v163 = vadd.f32 0.0, %v162
    %v164 = vpop.f32.mrf.mxu0
    %v165 = vadd.f32 0.0, %v164
    %166 = vdwg.mxu0
    %v173 = vunpack.c.l.b16 %v63
    %v174 = vunpack.c.l.b16 %v64
    %v175 = vunpack.c.l.b16 %v65
    %v176 = vunpack.c.l.b16 %v66
    %v177 = vunpack.c.l.b16 %v67
    %v178 = vunpack.c.l.b16 %v68
    %v179 = vpack.c.b16 %v174, %v173
    %v180 = vpack.c.b16 %v176, %v175
    %v181 = vpack.c.b16 %v178, %v177
    %185 = vmatpush.bf16.msra.mxu0 %v124
    %186 = vmatpush.bf16.msra.mxu0 %v123
    %187 = vmatpush.bf16.msra.mxu0 %v122
    %188 = vmatpush.bf16.msra.mxu0 %v121
    %189 = vmatpush.bf16.msra.mxu0 %v120
    %190 = vmatpush.bf16.msra.mxu0 %v119
    %191 = vmatpush.bf16.msra.mxu0 %v118
    %192 = vmatpush.bf16.msra.mxu0 %v117
    %193 = vmatmul.bf16.gmra.mxu0 %v179
    %v194 = vpop.f32.mrf.mxu0
    %v195 = vadd.f32 %v153, %v194
    %v196 = vpop.f32.mrf.mxu0
    %v197 = vadd.f32 %v155, %v196
    %198 = vmatmul.bf16.gmra.mxu0 %v180
    %v199 = vpop.f32.mrf.mxu0
    %v200 = vadd.f32 %v158, %v199
    %v201 = vpop.f32.mrf.mxu0
    %v202 = vadd.f32 %v160, %v201
    %203 = vmatmul.bf16.gmra.mxu0 %v181
    %v204 = vpop.f32.mrf.mxu0
    %v205 = vadd.f32 %v163, %v204
    %v206 = vpop.f32.mrf.mxu0
    %v207 = vadd.f32 %v165, %v206
    %208 = vdwg.mxu0
    %v215 = vunpack.c.l.b16 %v77
    %v216 = vunpack.c.l.b16 %v78
    %v217 = vunpack.c.l.b16 %v79
    %v218 = vunpack.c.l.b16 %v80
    %v219 = vunpack.c.l.b16 %v81
    %v220 = vunpack.c.l.b16 %v82
    %v221 = vpack.c.b16 %v216, %v215
    %v222 = vpack.c.b16 %v218, %v217
    %v223 = vpack.c.b16 %v220, %v219
    %227 = vmatpush.bf16.msra.mxu0 %v124
    %228 = vmatpush.bf16.msra.mxu0 %v123
    %229 = vmatpush.bf16.msra.mxu0 %v122
    %230 = vmatpush.bf16.msra.mxu0 %v121
    %231 = vmatpush.bf16.msra.mxu0 %v120
    %232 = vmatpush.bf16.msra.mxu0 %v119
    %233 = vmatpush.bf16.msra.mxu0 %v118
    %234 = vmatpush.bf16.msra.mxu0 %v117
    %235 = vmatmul.bf16.gmra.mxu0 %v221
    %v236 = vpop.f32.mrf.mxu0
    %v237 = vadd.f32 0.0, %v236
    %v238 = vpop.f32.mrf.mxu0
    %v239 = vadd.f32 0.0, %v238
    %240 = vmatmul.bf16.gmra.mxu0 %v222
    %v241 = vpop.f32.mrf.mxu0
    %v242 = vadd.f32 0.0, %v241
    %v243 = vpop.f32.mrf.mxu0
    %v244 = vadd.f32 0.0, %v243
    %245 = vmatmul.bf16.gmra.mxu0 %v223
    %v246 = vpop.f32.mrf.mxu0
    %v247 = vadd.f32 0.0, %v246
    %v248 = vpop.f32.mrf.mxu0
    %v249 = vadd.f32 0.0, %v248
    %250 = vdwg.mxu0
    %v251 = vadd.f32 %v195, %v237
    %v252 = vadd.f32 %v197, %v239
    %v253 = vadd.f32 %v200, %v242
    %v254 = vadd.f32 %v202, %v244
    %v255 = vadd.f32 %v205, %v247
    %v256 = vadd.f32 %v207, %v249
    %257 = vst [vmem:[#allocation2] sm:$0xff] %v251
    %258 = vst [vmem:[#allocation2 + $0x8] sm:$0xff] %v252
    %259 = vst [vmem:[#allocation2 + $0x10] sm:$0xff] %v253
    %260 = vst [vmem:[#allocation2 + $0x18] sm:$0xff] %v254
    %261 = vst [vmem:[#allocation2 + $0x20] sm:$0xff] %v255
    %262 = vst [vmem:[#allocation2 + $0x28] sm:$0xff] %v256
    %v263 = vld [vmem:[#allocation4 + $0x1] sm:$0x1]
    %v264 = vperm.slane %v263, 0
    %vm265 = vcmp.eq.s32.totalorder %v47, %v264
    %vm266 = vcmp.eq.s32.totalorder %v48, %v264
    %vm267 = vcmp.eq.s32.totalorder %v49, %v264
    %vm268 = vcmp.eq.s32.totalorder %v50, %v264
    %vm269 = vcmp.eq.s32.totalorder %v51, %v264
    %vm270 = vcmp.eq.s32.totalorder %v52, %v264
    %vm271 = vcmp.eq.s32.totalorder %v53, %v264
    %vm272 = vcmp.eq.s32.totalorder %v54, %v264
    %vm273 = vcmp.eq.s32.totalorder %v55, %v264
    %vm274 = vcmp.eq.s32.totalorder %v56, %v264
    %vm275 = vcmp.eq.s32.totalorder %v57, %v264
    %vm276 = vcmp.eq.s32.totalorder %v58, %v264
    %vm277 = vcmp.eq.s32.totalorder %v59, %v264
    %vm278 = vcmp.eq.s32.totalorder %v60, %v264
    %vm279 = vcmp.eq.s32.totalorder %v61, %v264
    %vm280 = vcmp.eq.s32.totalorder %v62, %v264
    %v281 = vsel %vm265, 1.0, 0.0
    %v282 = vsel %vm266, 1.0, 0.0
    %v283 = vsel %vm267, 1.0, 0.0
    %v284 = vsel %vm268, 1.0, 0.0
    %v285 = vsel %vm269, 1.0, 0.0
    %v286 = vsel %vm270, 1.0, 0.0
    %v287 = vsel %vm271, 1.0, 0.0
    %v288 = vsel %vm272, 1.0, 0.0
    %v289 = vsel %vm273, 1.0, 0.0
    %v290 = vsel %vm274, 1.0, 0.0
    %v291 = vsel %vm275, 1.0, 0.0
    %v292 = vsel %vm276, 1.0, 0.0
    %v293 = vsel %vm277, 1.0, 0.0
    %v294 = vsel %vm278, 1.0, 0.0
    %v295 = vsel %vm279, 1.0, 0.0
    %v296 = vsel %vm280, 1.0, 0.0
    %v297 = vpack.c.bf16 %v282, %v281
    %v298 = vpack.c.bf16 %v284, %v283
    %v299 = vpack.c.bf16 %v286, %v285
    %v300 = vpack.c.bf16 %v288, %v287
    %v301 = vpack.c.bf16 %v290, %v289
    %v302 = vpack.c.bf16 %v292, %v291
    %v303 = vpack.c.bf16 %v294, %v293
    %v304 = vpack.c.bf16 %v296, %v295
    %305 = vmatpush.bf16.msra.mxu0 %v304
    %306 = vmatpush.bf16.msra.mxu0 %v303
    %307 = vmatpush.bf16.msra.mxu0 %v302
    %308 = vmatpush.bf16.msra.mxu0 %v301
    %309 = vmatpush.bf16.msra.mxu0 %v300
    %310 = vmatpush.bf16.msra.mxu0 %v299
    %311 = vmatpush.bf16.msra.mxu0 %v298
    %312 = vmatpush.bf16.msra.mxu0 %v297
    %313 = vmatmul.bf16.gmra.mxu0 %v137
    %v314 = vpop.f32.mrf.mxu0
    %v315 = vadd.f32 0.0, %v314
    %v316 = vpop.f32.mrf.mxu0
    %v317 = vadd.f32 0.0, %v316
    %318 = vmatmul.bf16.gmra.mxu0 %v138
    %v319 = vpop.f32.mrf.mxu0
    %v320 = vadd.f32 0.0, %v319
    %v321 = vpop.f32.mrf.mxu0
    %v322 = vadd.f32 0.0, %v321
    %323 = vmatmul.bf16.gmra.mxu0 %v139
    %v324 = vpop.f32.mrf.mxu0
    %v325 = vadd.f32 0.0, %v324
    %v326 = vpop.f32.mrf.mxu0
    %v327 = vadd.f32 0.0, %v326
    %328 = vdwg.mxu0
    %329 = vmatpush.bf16.msra.mxu0 %v304
    %330 = vmatpush.bf16.msra.mxu0 %v303
    %331 = vmatpush.bf16.msra.mxu0 %v302
    %332 = vmatpush.bf16.msra.mxu0 %v301
    %333 = vmatpush.bf16.msra.mxu0 %v300
    %334 = vmatpush.bf16.msra.mxu0 %v299
    %335 = vmatpush.bf16.msra.mxu0 %v298
    %336 = vmatpush.bf16.msra.mxu0 %v297
    %337 = vmatmul.bf16.gmra.mxu0 %v179
    %v338 = vpop.f32.mrf.mxu0
    %v339 = vadd.f32 %v315, %v338
    %v340 = vpop.f32.mrf.mxu0
    %v341 = vadd.f32 %v317, %v340
    %342 = vmatmul.bf16.gmra.mxu0 %v180
    %v343 = vpop.f32.mrf.mxu0
    %v344 = vadd.f32 %v320, %v343
    %v345 = vpop.f32.mrf.mxu0
    %v346 = vadd.f32 %v322, %v345
    %347 = vmatmul.bf16.gmra.mxu0 %v181
    %v348 = vpop.f32.mrf.mxu0
    %v349 = vadd.f32 %v325, %v348
    %v350 = vpop.f32.mrf.mxu0
    %v351 = vadd.f32 %v327, %v350
    %352 = vdwg.mxu0
    %353 = vmatpush.bf16.msra.mxu0 %v304
    %354 = vmatpush.bf16.msra.mxu0 %v303
    %355 = vmatpush.bf16.msra.mxu0 %v302
    %356 = vmatpush.bf16.msra.mxu0 %v301
    %357 = vmatpush.bf16.msra.mxu0 %v300
    %358 = vmatpush.bf16.msra.mxu0 %v299
    %359 = vmatpush.bf16.msra.mxu0 %v298
    %360 = vmatpush.bf16.msra.mxu0 %v297
    %361 = vmatmul.bf16.gmra.mxu0 %v221
    %v362 = vpop.f32.mrf.mxu0
    %v363 = vadd.f32 0.0, %v362
    %v364 = vpop.f32.mrf.mxu0
    %v365 = vadd.f32 0.0, %v364
    %366 = vmatmul.bf16.gmra.mxu0 %v222
    %v367 = vpop.f32.mrf.mxu0
    %v368 = vadd.f32 0.0, %v367
    %v369 = vpop.f32.mrf.mxu0
    %v370 = vadd.f32 0.0, %v369
    %371 = vmatmul.bf16.gmra.mxu0 %v223
    %v372 = vpop.f32.mrf.mxu0
    %v373 = vadd.f32 0.0, %v372
    %v374 = vpop.f32.mrf.mxu0
    %v375 = vadd.f32 0.0, %v374
    %376 = vdwg.mxu0
    %v377 = vadd.f32 %v339, %v363
    %v378 = vadd.f32 %v341, %v365
    %v379 = vadd.f32 %v344, %v368
    %v380 = vadd.f32 %v346, %v370
    %v381 = vadd.f32 %v349, %v373
    %v382 = vadd.f32 %v351, %v375
    %s383 = scalar_lea.vmem [#allocation2], 48
    %384 = vst [vmem:[%s383] sm:$0xff] %v377
    %385 = vst [vmem:[%s383 + $0x8] sm:$0xff] %v378
    %386 = vst [vmem:[%s383 + $0x10] sm:$0xff] %v379
    %387 = vst [vmem:[%s383 + $0x18] sm:$0xff] %v380
    %388 = vst [vmem:[%s383 + $0x20] sm:$0xff] %v381
    %389 = vst [vmem:[%s383 + $0x28] sm:$0xff] %v382
    %v390 = vld [vmem:[#allocation4 + $0x2] sm:$0x1]
    %v391 = vperm.slane %v390, 0
    %vm392 = vcmp.eq.s32.totalorder %v47, %v391
    %vm393 = vcmp.eq.s32.totalorder %v48, %v391
    %vm394 = vcmp.eq.s32.totalorder %v49, %v391
    %vm395 = vcmp.eq.s32.totalorder %v50, %v391
    %vm396 = vcmp.eq.s32.totalorder %v51, %v391
    %vm397 = vcmp.eq.s32.totalorder %v52, %v391
    %vm398 = vcmp.eq.s32.totalorder %v53, %v391
    %vm399 = vcmp.eq.s32.totalorder %v54, %v391
    %vm400 = vcmp.eq.s32.totalorder %v55, %v391
    %vm401 = vcmp.eq.s32.totalorder %v56, %v391
    %vm402 = vcmp.eq.s32.totalorder %v57, %v391
    %vm403 = vcmp.eq.s32.totalorder %v58, %v391
    %vm404 = vcmp.eq.s32.totalorder %v59, %v391
    %vm405 = vcmp.eq.s32.totalorder %v60, %v391
    %vm406 = vcmp.eq.s32.totalorder %v61, %v391
    %vm407 = vcmp.eq.s32.totalorder %v62, %v391
    %v408 = vsel %vm392, 1.0, 0.0
    %v409 = vsel %vm393, 1.0, 0.0
    %v410 = vsel %vm394, 1.0, 0.0
    %v411 = vsel %vm395, 1.0, 0.0
    %v412 = vsel %vm396, 1.0, 0.0
    %v413 = vsel %vm397, 1.0, 0.0
    %v414 = vsel %vm398, 1.0, 0.0
    %v415 = vsel %vm399, 1.0, 0.0
    %v416 = vsel %vm400, 1.0, 0.0
    %v417 = vsel %vm401, 1.0, 0.0
    %v418 = vsel %vm402, 1.0, 0.0
    %v419 = vsel %vm403, 1.0, 0.0
    %v420 = vsel %vm404, 1.0, 0.0
    %v421 = vsel %vm405, 1.0, 0.0
    %v422 = vsel %vm406, 1.0, 0.0
    %v423 = vsel %vm407, 1.0, 0.0
    %v424 = vpack.c.bf16 %v409, %v408
    %v425 = vpack.c.bf16 %v411, %v410
    %v426 = vpack.c.bf16 %v413, %v412
    %v427 = vpack.c.bf16 %v415, %v414
    %v428 = vpack.c.bf16 %v417, %v416
    %v429 = vpack.c.bf16 %v419, %v418
    %v430 = vpack.c.bf16 %v421, %v420
    %v431 = vpack.c.bf16 %v423, %v422
    %432 = vmatpush.bf16.msra.mxu0 %v431
    %433 = vmatpush.bf16.msra.mxu0 %v430
    %434 = vmatpush.bf16.msra.mxu0 %v429
    %435 = vmatpush.bf16.msra.mxu0 %v428
    %436 = vmatpush.bf16.msra.mxu0 %v427
    %437 = vmatpush.bf16.msra.mxu0 %v426
    %438 = vmatpush.bf16.msra.mxu0 %v425
    %439 = vmatpush.bf16.msra.mxu0 %v424
    %440 = vmatmul.bf16.gmra.mxu0 %v137
    %v441 = vpop.f32.mrf.mxu0
    %v442 = vadd.f32 0.0, %v441
    %v443 = vpop.f32.mrf.mxu0
    %v444 = vadd.f32 0.0, %v443
    %445 = vmatmul.bf16.gmra.mxu0 %v138
    %v446 = vpop.f32.mrf.mxu0
    %v447 = vadd.f32 0.0, %v446
    %v448 = vpop.f32.mrf.mxu0
    %v449 = vadd.f32 0.0, %v448
    %450 = vmatmul.bf16.gmra.mxu0 %v139
    %v451 = vpop.f32.mrf.mxu0
    %v452 = vadd.f32 0.0, %v451
    %v453 = vpop.f32.mrf.mxu0
    %v454 = vadd.f32 0.0, %v453
    %455 = vdwg.mxu0
    %456 = vmatpush.bf16.msra.mxu0 %v431
    %457 = vmatpush.bf16.msra.mxu0 %v430
    %458 = vmatpush.bf16.msra.mxu0 %v429
    %459 = vmatpush.bf16.msra.mxu0 %v428
    %460 = vmatpush.bf16.msra.mxu0 %v427
    %461 = vmatpush.bf16.msra.mxu0 %v426
    %462 = vmatpush.bf16.msra.mxu0 %v425
    %463 = vmatpush.bf16.msra.mxu0 %v424
    %464 = vmatmul.bf16.gmra.mxu0 %v179
    %v465 = vpop.f32.mrf.mxu0
    %v466 = vadd.f32 %v442, %v465
    %v467 = vpop.f32.mrf.mxu0
    %v468 = vadd.f32 %v444, %v467
    %469 = vmatmul.bf16.gmra.mxu0 %v180
    %v470 = vpop.f32.mrf.mxu0
    %v471 = vadd.f32 %v447, %v470
    %v472 = vpop.f32.mrf.mxu0
    %v473 = vadd.f32 %v449, %v472
    %474 = vmatmul.bf16.gmra.mxu0 %v181
    %v475 = vpop.f32.mrf.mxu0
    %v476 = vadd.f32 %v452, %v475
    %v477 = vpop.f32.mrf.mxu0
    %v478 = vadd.f32 %v454, %v477
    %479 = vdwg.mxu0
    %480 = vmatpush.bf16.msra.mxu0 %v431
    %481 = vmatpush.bf16.msra.mxu0 %v430
    %482 = vmatpush.bf16.msra.mxu0 %v429
    %483 = vmatpush.bf16.msra.mxu0 %v428
    %484 = vmatpush.bf16.msra.mxu0 %v427
    %485 = vmatpush.bf16.msra.mxu0 %v426
    %486 = vmatpush.bf16.msra.mxu0 %v425
    %487 = vmatpush.bf16.msra.mxu0 %v424
    %488 = vmatmul.bf16.gmra.mxu0 %v221
    %v489 = vpop.f32.mrf.mxu0
    %v490 = vadd.f32 0.0, %v489
    %v491 = vpop.f32.mrf.mxu0
    %v492 = vadd.f32 0.0, %v491
    %493 = vmatmul.bf16.gmra.mxu0 %v222
    %v494 = vpop.f32.mrf.mxu0
    %v495 = vadd.f32 0.0, %v494
    %v496 = vpop.f32.mrf.mxu0
    %v497 = vadd.f32 0.0, %v496
    %498 = vmatmul.bf16.gmra.mxu0 %v223
    %v499 = vpop.f32.mrf.mxu0
    %v500 = vadd.f32 0.0, %v499
    %v501 = vpop.f32.mrf.mxu0
    %v502 = vadd.f32 0.0, %v501
    %503 = vdwg.mxu0
    %v504 = vadd.f32 %v466, %v490
    %v505 = vadd.f32 %v468, %v492
    %v506 = vadd.f32 %v471, %v495
    %v507 = vadd.f32 %v473, %v497
    %v508 = vadd.f32 %v476, %v500
    %v509 = vadd.f32 %v478, %v502
    %s510 = scalar_lea.vmem [#allocation2], 96
    %511 = vst [vmem:[%s510] sm:$0xff] %v504
    %512 = vst [vmem:[%s510 + $0x8] sm:$0xff] %v505
    %513 = vst [vmem:[%s510 + $0x10] sm:$0xff] %v506
    %514 = vst [vmem:[%s510 + $0x18] sm:$0xff] %v507
    %515 = vst [vmem:[%s510 + $0x20] sm:$0xff] %v508
    %516 = vst [vmem:[%s510 + $0x28] sm:$0xff] %v509
    %v517 = vld [vmem:[#allocation4 + $0x3] sm:$0x1]
    %v518 = vperm.slane %v517, 0
    %vm519 = vcmp.eq.s32.totalorder %v47, %v518
    %vm520 = vcmp.eq.s32.totalorder %v48, %v518
    %vm521 = vcmp.eq.s32.totalorder %v49, %v518
    %vm522 = vcmp.eq.s32.totalorder %v50, %v518
    %vm523 = vcmp.eq.s32.totalorder %v51, %v518
    %vm524 = vcmp.eq.s32.totalorder %v52, %v518
    %vm525 = vcmp.eq.s32.totalorder %v53, %v518
    %vm526 = vcmp.eq.s32.totalorder %v54, %v518
    %vm527 = vcmp.eq.s32.totalorder %v55, %v518
    %vm528 = vcmp.eq.s32.totalorder %v56, %v518
    %vm529 = vcmp.eq.s32.totalorder %v57, %v518
    %vm530 = vcmp.eq.s32.totalorder %v58, %v518
    %vm531 = vcmp.eq.s32.totalorder %v59, %v518
    %vm532 = vcmp.eq.s32.totalorder %v60, %v518
    %vm533 = vcmp.eq.s32.totalorder %v61, %v518
    %vm534 = vcmp.eq.s32.totalorder %v62, %v518
    %v535 = vsel %vm519, 1.0, 0.0
    %v536 = vsel %vm520, 1.0, 0.0
    %v537 = vsel %vm521, 1.0, 0.0
    %v538 = vsel %vm522, 1.0, 0.0
    %v539 = vsel %vm523, 1.0, 0.0
    %v540 = vsel %vm524, 1.0, 0.0
    %v541 = vsel %vm525, 1.0, 0.0
    %v542 = vsel %vm526, 1.0, 0.0
    %v543 = vsel %vm527, 1.0, 0.0
    %v544 = vsel %vm528, 1.0, 0.0
    %v545 = vsel %vm529, 1.0, 0.0
    %v546 = vsel %vm530, 1.0, 0.0
    %v547 = vsel %vm531, 1.0, 0.0
    %v548 = vsel %vm532, 1.0, 0.0
    %v549 = vsel %vm533, 1.0, 0.0
    %v550 = vsel %vm534, 1.0, 0.0
    %v551 = vpack.c.bf16 %v536, %v535
    %v552 = vpack.c.bf16 %v538, %v537
    %v553 = vpack.c.bf16 %v540, %v539
    %v554 = vpack.c.bf16 %v542, %v541
    %v555 = vpack.c.bf16 %v544, %v543
    %v556 = vpack.c.bf16 %v546, %v545
    %v557 = vpack.c.bf16 %v548, %v547
    %v558 = vpack.c.bf16 %v550, %v549
    %559 = vmatpush.bf16.msra.mxu0 %v558
    %560 = vmatpush.bf16.msra.mxu0 %v557
    %561 = vmatpush.bf16.msra.mxu0 %v556
    %562 = vmatpush.bf16.msra.mxu0 %v555
    %563 = vmatpush.bf16.msra.mxu0 %v554
    %564 = vmatpush.bf16.msra.mxu0 %v553
    %565 = vmatpush.bf16.msra.mxu0 %v552
    %566 = vmatpush.bf16.msra.mxu0 %v551
    %567 = vmatmul.bf16.gmra.mxu0 %v137
    %v568 = vpop.f32.mrf.mxu0
    %v569 = vadd.f32 0.0, %v568
    %v570 = vpop.f32.mrf.mxu0
    %v571 = vadd.f32 0.0, %v570
    %572 = vmatmul.bf16.gmra.mxu0 %v138
    %v573 = vpop.f32.mrf.mxu0
    %v574 = vadd.f32 0.0, %v573
    %v575 = vpop.f32.mrf.mxu0
    %v576 = vadd.f32 0.0, %v575
    %577 = vmatmul.bf16.gmra.mxu0 %v139
    %v578 = vpop.f32.mrf.mxu0
    %v579 = vadd.f32 0.0, %v578
    %v580 = vpop.f32.mrf.mxu0
    %v581 = vadd.f32 0.0, %v580
    %582 = vdwg.mxu0
    %583 = vmatpush.bf16.msra.mxu0 %v558
    %584 = vmatpush.bf16.msra.mxu0 %v557
    %585 = vmatpush.bf16.msra.mxu0 %v556
    %586 = vmatpush.bf16.msra.mxu0 %v555
    %587 = vmatpush.bf16.msra.mxu0 %v554
    %588 = vmatpush.bf16.msra.mxu0 %v553
    %589 = vmatpush.bf16.msra.mxu0 %v552
    %590 = vmatpush.bf16.msra.mxu0 %v551
    %591 = vmatmul.bf16.gmra.mxu0 %v179
    %v592 = vpop.f32.mrf.mxu0
    %v593 = vadd.f32 %v569, %v592
    %v594 = vpop.f32.mrf.mxu0
    %v595 = vadd.f32 %v571, %v594
    %596 = vmatmul.bf16.gmra.mxu0 %v180
    %v597 = vpop.f32.mrf.mxu0
    %v598 = vadd.f32 %v574, %v597
    %v599 = vpop.f32.mrf.mxu0
    %v600 = vadd.f32 %v576, %v599
    %601 = vmatmul.bf16.gmra.mxu0 %v181
    %v602 = vpop.f32.mrf.mxu0
    %v603 = vadd.f32 %v579, %v602
    %v604 = vpop.f32.mrf.mxu0
    %v605 = vadd.f32 %v581, %v604
    %606 = vdwg.mxu0
    %607 = vmatpush.bf16.msra.mxu0 %v558
    %608 = vmatpush.bf16.msra.mxu0 %v557
    %609 = vmatpush.bf16.msra.mxu0 %v556
    %610 = vmatpush.bf16.msra.mxu0 %v555
    %611 = vmatpush.bf16.msra.mxu0 %v554
    %612 = vmatpush.bf16.msra.mxu0 %v553
    %613 = vmatpush.bf16.msra.mxu0 %v552
    %614 = vmatpush.bf16.msra.mxu0 %v551
    %615 = vmatmul.bf16.gmra.mxu0 %v221
    %v616 = vpop.f32.mrf.mxu0
    %v617 = vadd.f32 0.0, %v616
    %v618 = vpop.f32.mrf.mxu0
    %v619 = vadd.f32 0.0, %v618
    %620 = vmatmul.bf16.gmra.mxu0 %v222
    %v621 = vpop.f32.mrf.mxu0
    %v622 = vadd.f32 0.0, %v621
    %v623 = vpop.f32.mrf.mxu0
    %v624 = vadd.f32 0.0, %v623
    %625 = vmatmul.bf16.gmra.mxu0 %v223
    %v626 = vpop.f32.mrf.mxu0
    %v627 = vadd.f32 0.0, %v626
    %v628 = vpop.f32.mrf.mxu0
    %v629 = vadd.f32 0.0, %v628
    %630 = vdwg.mxu0
    %v631 = vadd.f32 %v593, %v617
    %v632 = vadd.f32 %v595, %v619
    %v633 = vadd.f32 %v598, %v622
    %v634 = vadd.f32 %v600, %v624
    %v635 = vadd.f32 %v603, %v627
    %v636 = vadd.f32 %v605, %v629
    %s637 = scalar_lea.vmem [#allocation2], 144
    %638 = vst [vmem:[%s637] sm:$0xff] %v631
    %639 = vst [vmem:[%s637 + $0x8] sm:$0xff] %v632
    %640 = vst [vmem:[%s637 + $0x10] sm:$0xff] %v633
    %641 = vst [vmem:[%s637 + $0x18] sm:$0xff] %v634
    %642 = vst [vmem:[%s637 + $0x20] sm:$0xff] %v635
    %643 = vst [vmem:[%s637 + $0x28] sm:$0xff] %v636
    %v644 = vld [vmem:[%s383] sm:$0xff]
    %v645 = vld [vmem:[#allocation2 + $0x8] sm:$0xff]
    %v646 = vmul.f32 %v644, %v645
    %v647 = vadd.f32 %v646, 0.0
    %v648 = vld [vmem:[%s510] sm:$0xff]
    %v649 = vld [vmem:[#allocation2 + $0x10] sm:$0xff]
    %v650 = vmul.f32 %v648, %v649
    %v651 = vadd.f32 %v650, 0.0
    %v652 = vld [vmem:[%s637] sm:$0xff]
    %v653 = vld [vmem:[#allocation2 + $0x18] sm:$0xff]
    %v654 = vmul.f32 %v652, %v653
    %v655 = vadd.f32 %v647, %v654
    %v656 = vld [vmem:[%s510 + $0x8] sm:$0xff]
    %v657 = vld [vmem:[%s383 + $0x10] sm:$0xff]
    %v658 = vmul.f32 %v656, %v657
    %v659 = vadd.f32 %v651, %v658
    %v660 = vld [vmem:[%s637 + $0x8] sm:$0xff]
    %v661 = vld [vmem:[%s383 + $0x18] sm:$0xff]
    %v662 = vmul.f32 %v660, %v661
    %v663 = vadd.f32 %v655, %v662
    %v664 = vld [vmem:[%s637 + $0x10] sm:$0xff]
    %v665 = vld [vmem:[%s510 + $0x18] sm:$0xff]
    %v666 = vmul.f32 %v664, %v665
    %v667 = vadd.f32 %v659, %v666
    %v668 = vadd.f32 %v663, %v667
    %v669 = vrot.slane %v668, 4
    %v670 = vadd.f32 %v668, %v669
    %v671 = vrot.slane %v670, 2
    %v672 = vadd.f32 %v670, %v671
    %v673 = vrot.slane %v672, 1
    %v674 = vadd.f32 %v672, %v673
    %v675 = vld [vmem:[#allocation2 + $0x20] sm:$0x1]
    %v676 = vadd.f32 %v675, 0.0
    %v677 = vld [vmem:[%s383 + $0x20] sm:$0x1]
    %v678 = vadd.f32 %v676, %v677
    %v679 = vld [vmem:[%s510 + $0x20] sm:$0x1]
    %v680 = vadd.f32 %v678, %v679
    %v681 = vld [vmem:[%s637 + $0x20] sm:$0x1]
    %v682 = vadd.f32 %v680, %v681
    %v683 = vadd.f32 %v682, %v674
    %s684 = sld [smem:[#allocation3]]
    %v685 = vstv %s684
    %v686 = vadd.f32 %v683, %v685
    %687 = vst [vmem:[#allocation9] sm:$0x1] %v686
    // Predicated region
    $region22: #{tpu_custom_call.1} parent=1 // pred_check
      _
    $region23: #{tpu_custom_call.1} parent=1 // pred_check_branch
      %689 = sbr.rel (0) target = $region25
    $region24: #{tpu_custom_call.1} parent=1 // pred_region
      %691 = vsyncadd [#allocation6], 0
      %s693 = sshll.u32 [#allocation9], 4
      %s694 = int_to_ptr.vmem [resolvable:$true] %s693
      %s695 = sshll.u32 %s3, 4
      %s696 = int_to_ptr.hbm [resolvable:$true] %s695
      %698 = dma.vmem_to_hbm [thread:$0]  %s694, 16, %s696, [#allocation6]
    $region25: #{tpu_custom_call.1} parent=1 // pred_fallthru
      _
    // Predicated region
    $region26: #{tpu_custom_call.1} parent=1 // pred_check
      _
    $region27: #{tpu_custom_call.1} parent=1 // pred_check_branch
      %700 = sbr.rel (0) target = $region29
    $region28: #{tpu_custom_call.1} parent=1 // pred_region
      %702 = dma.done [#allocation6], 16
    $region29: #{tpu_custom_call.1} parent=1 // pred_fallthru
      _
    %703 = vsyncpa [#allocation5], 1
    %704 = vsyncpa [#allocation8], 1
    %705 = vsyncpa [#allocation6], 1

</llo_original>
